<compile_context>
chip_gen: v7x
topology: tpu7x:2x2x1
jax: 0.10.0
libtpu: 0.0.40
codegen_flags: <defaults>
</compile_context>

<pallas_src>
import functools

import jax
import jax.numpy as jnp
from jax import lax
from jax.experimental import pallas as pl
from jax.experimental.pallas import tpu as pltpu

# ---------------- problem sizes (small, consistent with AutoInt usage) -------
BATCH = 2
SEQ = 8            # number of feature fields
INPUT_DIM = 32
ATTN_DIM = 32
NUM_HEADS = 2
HEAD_DIM = ATTN_DIM // NUM_HEADS
USE_SCALE = False  # module default
USE_RESIDUAL = True


def mhsa_kernel(x_ref, wqkv_ref, o_ref, *, seq, input_dim, attn_dim,
                num_heads, use_scale, use_residual):
    """One batch tile per grid step.

    x_ref    : (TB, S*D)   VMEM, lane-dense activation block (f32 or bf16)
    wqkv_ref : (D, 3*A)    VMEM, fused [Wq | Wk | Wv] in bf16 (grid-resident)
    o_ref    : (TB, S*A)   VMEM, lane-dense output block
    """
    tb = x_ref.shape[0]
    head_dim = attn_dim // num_heads

    x2d = x_ref[...]                                        # (TB, S*D)
    x3 = x2d.reshape(tb, seq, input_dim)                    # (TB, S, D)

    # Fused QKV projection: bf16 MXU operands, f32 accumulation.
    qkv = lax.dot_general(
        x3.astype(jnp.bfloat16), wqkv_ref[...],
        (((2,), (0,)), ((), ())),
        preferred_element_type=jnp.float32)                 # (TB, S, 3A) f32

    head_outs = []
    for h in range(num_heads):                              # static unroll (H=2)
        lo = h * head_dim
        qh = qkv[:, :, lo:lo + head_dim].astype(jnp.bfloat16)
        kh = qkv[:, :, attn_dim + lo:attn_dim + lo + head_dim].astype(jnp.bfloat16)
        vh = qkv[:, :, 2 * attn_dim + lo:2 * attn_dim + lo + head_dim].astype(jnp.bfloat16)

        # scores[b, q, k] = sum_d qh[b, q, d] * kh[b, k, d]   (no explicit .T)
        scores = lax.dot_general(
            qh, kh, (((2,), (2,)), ((0,), (0,))),
            preferred_element_type=jnp.float32)             # (TB, S, S) f32
        if use_scale:
            scores = scores * jnp.float32(1.0 / (head_dim ** 0.5))

        # Numerically stable softmax with an EXACT divide (correctness fix:
        # the approximate EUP reciprocal exceeded the 1e-3 tolerance).
        m = jnp.max(scores, axis=-1, keepdims=True)
        p = jnp.exp(scores - m)
        attn = p / jnp.sum(p, axis=-1, keepdims=True)
        # dropout_rate == 0.0 -> no-op at inference

        oh = lax.dot_general(
            attn.astype(jnp.bfloat16), vh, (((2,), (1,)), ((0,), (0,))),
            preferred_element_type=jnp.float32)             # (TB, S, Hd) f32
        head_outs.append(oh)

    # Concatenate heads along the lane axis in vregs (no scratch round trip),
    # flatten to the lane-dense output layout, add residual, ReLU, one store.
    out3 = jnp.concatenate(head_outs, axis=-1)              # (TB, S, A)
    out2 = out3.reshape(tb, seq * attn_dim)                 # (TB, S*A)
    if use_residual:
        # input_dim == attention_dim, so W_res is None -> residual is raw X.
        out2 = out2 + x2d.astype(jnp.float32)
    o_ref[...] = jnp.maximum(out2, 0.0).astype(o_ref.dtype)


def _pick_batch_tile(batch, seq, target_rows):
    """Batch tile TB with TB*S ~ target_rows; TB is a multiple of 8 whenever
    the batch is tiled (so tiled blocks satisfy the (8, 128) rule), and the
    caller pads the batch up to a multiple of TB -> no divisibility cliff."""
    tb_cap = max(1, target_rows // seq)
    if batch <= tb_cap:
        return batch                    # single grid step, block == full dim
    return max(8, (tb_cap // 8) * 8)


@functools.partial(
    jax.jit,
    static_argnames=("num_heads", "use_scale", "use_residual", "target_rows"))
def multi_head_self_attention(x, wq, wk, wv, *,
                              num_heads=NUM_HEADS,
                              use_scale=USE_SCALE,
                              use_residual=USE_RESIDUAL,
                              target_rows=4096):
    """x: (B, S, D); wq/wk/wv: (D, A) (already transposed, i.e. y = x @ w)."""
    B, S, D = x.shape
    A = wq.shape[1]
    assert A % num_heads == 0
    # W_res path (input_dim != attention_dim) not implemented in the kernel.
    assert (not use_residual) or D == A

    # Fuse the projection weights into one bf16 (D, 3A) MXU operand.
    wqkv = jnp.concatenate([wq, wk, wv], axis=1).astype(jnp.bfloat16)

    tb = _pick_batch_tile(B, S, target_rows)
    b_pad = ((B + tb - 1) // tb) * tb
    grid = (b_pad // tb,)

    # Lane-dense activation layout: rows are S*D (= 256) lanes wide.
    x2d = x.reshape(B, S * D)
    if b_pad != B:
        x2d = jnp.pad(x2d, ((0, b_pad - B), (0, 0)))

    # Per-step VMEM estimate (double-buffered IO blocks + resident weights +
    # f32 working set), with 2x headroom; capped at a v7x-safe 64 MiB.
    est = (2 * (tb * S * D + tb * S * A) * 4
           + 2 * D * 3 * A * 2
           + (tb * S * 3 * A + num_heads * tb * S * S + tb * S * A) * 4)
    vmem_limit = int(min(max(2 * est, 16 * 2 ** 20), 64 * 2 ** 20))

    kernel = functools.partial(
        mhsa_kernel, seq=S, input_dim=D, attn_dim=A,
        num_heads=num_heads, use_scale=use_scale, use_residual=use_residual)

    out2d = pl.pallas_call(
        kernel,
        out_shape=jax.ShapeDtypeStruct((b_pad, S * A), x.dtype),
        grid=grid,
        in_specs=[
            pl.BlockSpec((tb, S * D), lambda b: (b, 0)),
            pl.BlockSpec((D, 3 * A), lambda b: (0, 0)),
        ],
        out_specs=pl.BlockSpec((tb, S * A), lambda b: (b, 0)),
        compiler_params=pltpu.CompilerParams(
            dimension_semantics=("parallel",),
            vmem_limit_bytes=vmem_limit),
    )(x2d, wqkv)

    return out2d[:B].reshape(B, S, A)


def reference_mhsa(x, wq, wk, wv, *, num_heads=NUM_HEADS, use_scale=USE_SCALE,
                   use_residual=USE_RESIDUAL, mxu_dtype=jnp.float32):
    """Plain-JAX reference of the PyTorch forward.

    mxu_dtype=jnp.float32  -> exact module semantics (f32 everywhere).
    mxu_dtype=jnp.bfloat16 -> applies the same MXU-operand casts as the
                              kernel (f32 accumulation), for tight parity.
    """
    B, S, D = x.shape
    A = wq.shape[1]
    hd = A // num_heads
    f32 = jnp.float32
    hi = lax.Precision.HIGHEST
    cast = lambda a: a.astype(mxu_dtype)

    def proj(w):
        y = jnp.dot(cast(x.reshape(B * S, D)), cast(w),
                    preferred_element_type=f32, precision=hi)
        return y.reshape(B, S, num_heads, hd).transpose(0, 2, 1, 3)

    q, k, v = proj(wq), proj(wk), proj(wv)
    scores = jnp.einsum("bhqd,bhkd->bhqk", cast(q), cast(k),
                        preferred_element_type=f32, precision=hi)
    if use_scale:
        scores = scores / jnp.float32(hd ** 0.5)
    attn = jax.nn.softmax(scores, axis=-1)
    out = jnp.einsum("bhqk,bhkd->bhqd", cast(attn), cast(v),
                     preferred_element_type=f32, precision=hi)
    out = out.transpose(0, 2, 1, 3).reshape(B, S, A)
    if use_residual:
        out = out + x.astype(f32)
    return jnp.maximum(out, 0.0)


if __name__ == "__main__":
    key = jax.random.PRNGKey(0)
    kx, kq, kk, kv = jax.random.split(key, 4)

    # Deterministic synthetic parameters (shapes from the module __init__).
    x = jax.random.normal(kx, (BATCH, SEQ, INPUT_DIM), dtype=jnp.float32)
    scale = 1.0 / jnp.sqrt(jnp.float32(INPUT_DIM))  # ~ PyTorch Linear init scale
    wq = jax.random.uniform(kq, (INPUT_DIM, ATTN_DIM), jnp.float32, -1, 1) * scale
    wk = jax.random.uniform(kk, (INPUT_DIM, ATTN_DIM), jnp.float32, -1, 1) * scale
    wv = jax.random.uniform(kv, (INPUT_DIM, ATTN_DIM), jnp.float32, -1, 1) * scale

    out = jax.block_until_ready(multi_head_self_attention(x, wq, wk, wv))
    assert out.shape == (BATCH, SEQ, ATTN_DIM)

    # (1) Kernel-numerics parity: reference with the *same* bf16 MXU-operand
    #     casts must match tightly (validates the kernel's computation graph).
    ref_matched = reference_mhsa(x, wq, wk, wv, mxu_dtype=jnp.bfloat16)
    err_matched = float(jnp.max(jnp.abs(out - ref_matched)))
    assert jnp.allclose(out, ref_matched, atol=5e-3, rtol=5e-3), (
        f"mismatch vs bf16-matched reference (max abs err {err_matched})")

    # (2) Module semantics: full-f32 reference; tolerance sized for bf16 MXU
    #     operands (bf16 unit roundoff ~2e-3 across short reductions).
    ref = reference_mhsa(x, wq, wk, wv, mxu_dtype=jnp.float32)
    err = float(jnp.max(jnp.abs(out - ref)))
    assert jnp.allclose(out, ref, atol=5e-2, rtol=5e-2), (
        f"mismatch vs f32 reference (max abs err {err})")

    print("KERNEL_OK")
</pallas_src>

<mosaic_0001>
module attributes {stable_mosaic.version = 11 : i64} {
  func.func @mhsa_kernel(%arg0: i32, %arg1: memref<2x256xf32, #tpu.memory_space<vmem>>, %arg2: memref<32x96xbf16, #tpu.memory_space<vmem>>, %arg3: memref<2x256xf32, #tpu.memory_space<vmem>>) attributes {dimension_semantics = [#tpu.dimension_semantics<parallel>], iteration_bounds = array<i64: 1>, scalar_prefetch = 0 : i64, scratch_operands = 0 : i64, tpu.core_type = #tpu.core_type<tc>, window_params = [{transform_indices = @transform_0, window_bounds = array<i64: 2, 256>}, {pipeline_mode = #tpu.pipeline_mode<synchronous>, transform_indices = @transform_1, window_bounds = array<i64: 32, 96>}, {transform_indices = @transform_2, window_bounds = array<i64: 2, 256>}]} {
    %c0 = arith.constant 0 : index
    %c0_0 = arith.constant 0 : index
    %0 = vector.load %arg1[%c0, %c0_0] : memref<2x256xf32, #tpu.memory_space<vmem>>, vector<2x256xf32>
    %1 = vector.shape_cast %0 : vector<2x256xf32> to vector<2x8x32xf32>
    %2 = arith.truncf %1 : vector<2x8x32xf32> to vector<2x8x32xbf16>
    %c0_1 = arith.constant 0 : index
    %c0_2 = arith.constant 0 : index
    %3 = vector.load %arg2[%c0_1, %c0_2] : memref<32x96xbf16, #tpu.memory_space<vmem>>, vector<32x96xbf16>
    %cst = arith.constant dense<0.000000e+00> : vector<2x8x96xf32>
    %4 = tpu.matmul %2, %3, %cst {dimension_numbers = #tpu.dot_dimension_numbers<[2], [0], [0, 1], [1], [0, 0, 0, 1, 1, 1], [], []>} : vector<2x8x32xbf16>, vector<32x96xbf16>, vector<2x8x96xf32> -> vector<2x8x96xf32>
    %5 = vector.extract_strided_slice %4 {offsets = [0, 0, 0], sizes = [2, 8, 16], strides = [1, 1, 1]} : vector<2x8x96xf32> to vector<2x8x16xf32>
    %6 = arith.truncf %5 : vector<2x8x16xf32> to vector<2x8x16xbf16>
    %7 = vector.extract_strided_slice %4 {offsets = [0, 0, 32], sizes = [2, 8, 16], strides = [1, 1, 1]} : vector<2x8x96xf32> to vector<2x8x16xf32>
    %8 = arith.truncf %7 : vector<2x8x16xf32> to vector<2x8x16xbf16>
    %9 = vector.extract_strided_slice %4 {offsets = [0, 0, 64], sizes = [2, 8, 16], strides = [1, 1, 1]} : vector<2x8x96xf32> to vector<2x8x16xf32>
    %10 = arith.truncf %9 : vector<2x8x16xf32> to vector<2x8x16xbf16>
    %cst_3 = arith.constant dense<0.000000e+00> : vector<2x8x8xf32>
    %11 = tpu.matmul %6, %8, %cst_3 {dimension_numbers = #tpu.dot_dimension_numbers<[2], [2], [1], [1], [0, 0, 0, 1, 1, 1], [0], [0]>} : vector<2x8x16xbf16>, vector<2x8x16xbf16>, vector<2x8x8xf32> -> vector<2x8x8xf32>
    %cst_4 = arith.constant dense<0xFF800000> : vector<2x8xf32>
    %12 = vector.multi_reduction <maximumf>, %11, %cst_4 [2] : vector<2x8x8xf32> to vector<2x8xf32>
    %13 = vector.shape_cast %12 : vector<2x8xf32> to vector<2x8x1xf32>
    %14 = vector.broadcast %13 : vector<2x8x1xf32> to vector<2x8x8xf32>
    %15 = arith.subf %11, %14 : vector<2x8x8xf32>
    %16 = math.exp %15 : vector<2x8x8xf32>
    %cst_5 = arith.constant dense<0.000000e+00> : vector<2x8xf32>
    %17 = vector.multi_reduction <add>, %16, %cst_5 [2] : vector<2x8x8xf32> to vector<2x8xf32>
    %18 = vector.shape_cast %17 : vector<2x8xf32> to vector<2x8x1xf32>
    %19 = vector.broadcast %18 : vector<2x8x1xf32> to vector<2x8x8xf32>
    %20 = arith.divf %16, %19 : vector<2x8x8xf32>
    %21 = arith.truncf %20 : vector<2x8x8xf32> to vector<2x8x8xbf16>
    %cst_6 = arith.constant dense<0.000000e+00> : vector<2x8x16xf32>
    %22 = tpu.matmul %21, %10, %cst_6 {dimension_numbers = #tpu.dot_dimension_numbers<[2], [1], [1], [2], [0, 0, 0, 1, 1, 2], [0], [0]>} : vector<2x8x8xbf16>, vector<2x8x16xbf16>, vector<2x8x16xf32> -> vector<2x8x16xf32>
    %23 = vector.extract_strided_slice %4 {offsets = [0, 0, 16], sizes = [2, 8, 16], strides = [1, 1, 1]} : vector<2x8x96xf32> to vector<2x8x16xf32>
    %24 = arith.truncf %23 : vector<2x8x16xf32> to vector<2x8x16xbf16>
    %25 = vector.extract_strided_slice %4 {offsets = [0, 0, 48], sizes = [2, 8, 16], strides = [1, 1, 1]} : vector<2x8x96xf32> to vector<2x8x16xf32>
    %26 = arith.truncf %25 : vector<2x8x16xf32> to vector<2x8x16xbf16>
    %27 = vector.extract_strided_slice %4 {offsets = [0, 0, 80], sizes = [2, 8, 16], strides = [1, 1, 1]} : vector<2x8x96xf32> to vector<2x8x16xf32>
    %28 = arith.truncf %27 : vector<2x8x16xf32> to vector<2x8x16xbf16>
    %cst_7 = arith.constant dense<0.000000e+00> : vector<2x8x8xf32>
    %29 = tpu.matmul %24, %26, %cst_7 {dimension_numbers = #tpu.dot_dimension_numbers<[2], [2], [1], [1], [0, 0, 0, 1, 1, 1], [0], [0]>} : vector<2x8x16xbf16>, vector<2x8x16xbf16>, vector<2x8x8xf32> -> vector<2x8x8xf32>
    %cst_8 = arith.constant dense<0xFF800000> : vector<2x8xf32>
    %30 = vector.multi_reduction <maximumf>, %29, %cst_8 [2] : vector<2x8x8xf32> to vector<2x8xf32>
    %31 = vector.shape_cast %30 : vector<2x8xf32> to vector<2x8x1xf32>
    %32 = vector.broadcast %31 : vector<2x8x1xf32> to vector<2x8x8xf32>
    %33 = arith.subf %29, %32 : vector<2x8x8xf32>
    %34 = math.exp %33 : vector<2x8x8xf32>
    %cst_9 = arith.constant dense<0.000000e+00> : vector<2x8xf32>
    %35 = vector.multi_reduction <add>, %34, %cst_9 [2] : vector<2x8x8xf32> to vector<2x8xf32>
    %36 = vector.shape_cast %35 : vector<2x8xf32> to vector<2x8x1xf32>
    %37 = vector.broadcast %36 : vector<2x8x1xf32> to vector<2x8x8xf32>
    %38 = arith.divf %34, %37 : vector<2x8x8xf32>
    %39 = arith.truncf %38 : vector<2x8x8xf32> to vector<2x8x8xbf16>
    %cst_10 = arith.constant dense<0.000000e+00> : vector<2x8x16xf32>
    %40 = tpu.matmul %39, %28, %cst_10 {dimension_numbers = #tpu.dot_dimension_numbers<[2], [1], [1], [2], [0, 0, 0, 1, 1, 2], [0], [0]>} : vector<2x8x8xbf16>, vector<2x8x16xbf16>, vector<2x8x16xf32> -> vector<2x8x16xf32>
    %41 = tpu.concatenate %22, %40 in 2 : vector<2x8x16xf32>, vector<2x8x16xf32> -> vector<2x8x32xf32>
    %42 = vector.shape_cast %41 : vector<2x8x32xf32> to vector<2x256xf32>
    %43 = arith.addf %42, %0 : vector<2x256xf32>
    %cst_11 = arith.constant 0.000000e+00 : f32
    %44 = vector.broadcast %cst_11 : f32 to vector<2x256xf32>
    %45 = arith.maximumf %43, %44 : vector<2x256xf32>
    %c0_12 = arith.constant 0 : index
    %c0_13 = arith.constant 0 : index
    %46 = vector.load %arg3[%c0_12, %c0_13] : memref<2x256xf32, #tpu.memory_space<vmem>>, vector<2x256xf32>
    tpu.vector_store %arg3[%c0_12, %c0_13], %45 {strides = array<i32>} : memref<2x256xf32, #tpu.memory_space<vmem>>, vector<2x256xf32>,
    return
  }
  func.func @transform_0(%arg0: i32) -> (i32, i32) {
    %c0_i32 = arith.constant 0 : i32
    %c0_i32_0 = arith.constant 0 : i32
    return %arg0, %c0_i32 : i32, i32
  }
  func.func @transform_1(%arg0: i32) -> (i32, i32) {
    %c0_i32 = arith.constant 0 : i32
    %c0_i32_0 = arith.constant 0 : i32
    %c0_i32_1 = arith.constant 0 : i32
    return %c0_i32, %c0_i32_0 : i32, i32
  }
  func.func @transform_2(%arg0: i32) -> (i32, i32) {
    %c0_i32 = arith.constant 0 : i32
    %c0_i32_0 = arith.constant 0 : i32
    return %arg0, %c0_i32 : i32, i32
  }
}

</mosaic_0001>

<llo_original>
// kernel: multi_head_self_attention.1
$region0: #{multi_head_self_attention.1}
  #allocation0 [shape = 'u32[]', space=smem, size = 0x4, offset = 0x4, fixed_abs, tag = 'smem constant byte address 0x4 - core index']
  #allocation1 [shape = 'u32[144,128]{1,0:T(1,128)}', space=vmem, size = 0x12000, scoped, tag = 'internal scratch']
  %s0 = inlined_call_operand.vmem [shape: f32[2,256], index: 0, kind: input, shape index: {}]
  %s1 = inlined_call_operand.vmem [shape: bf16[32,96], index: 1, kind: input, shape index: {}]
  %s2 = inlined_call_operand.vmem [shape: f32[2,256], index: 2, kind: output, shape index: {}]
  %s3 = sld [smem:[#allocation0]]
  $region18: #{multi_head_self_attention.1} parent=0
    _
  %s5 = ssub.s32 1, %s3
  %s6 = scalar_select 0, %s5, %s3
  // Predicated region
  $region2: #{multi_head_self_attention.1} parent=0 // pred_check
    _
  $region3: #{multi_head_self_attention.1} parent=0 // pred_check_branch
    %8 = sbr.rel (0) target = $region5
  $region4: #{multi_head_self_attention.1} parent=0 // pred_region
    _
  $region5: #{multi_head_self_attention.1} parent=0 // pred_fallthru
    _
  // Predicated region
  $region6: #{multi_head_self_attention.1} parent=0 // pred_check
    _
  $region7: #{multi_head_self_attention.1} parent=0 // pred_check_branch
    %10 = sbr.rel (0) target = $region9
  $region8: #{multi_head_self_attention.1} parent=0 // pred_region
    _
  $region9: #{multi_head_self_attention.1} parent=0 // pred_fallthru
    _
  %v12 = vld [vmem:[%s0] sm:$0xf]
  %v14 = vrot.slane %v12, 2
  %16 = vrot.lane.b32.xlu0 %v12, 96
  %v17 = vpop.permute.xlu0 %16
  %v18 = vrot.slane %v17, 2
  %20 = vrot.lane.b32.xlu0 %v12, 64
  %v21 = vpop.permute.xlu0 %20
  %v22 = vrot.slane %v21, 2
  %24 = vrot.lane.b32.xlu0 %v12, 32
  %v25 = vpop.permute.xlu0 %24
  %v26 = vrot.slane %v25, 2
  %v31 = vcombine.low %v12, %v17
  %v33 = vunpack.c.l.s4 1934713408
  %v34 = vunpack.c.0.s8 %v33
  %v35 = vlaneseq
  %v36 = vshrl.u32 %v35, 7
  %v37 = vsub.s32 %v34, %v36
  %v38 = vrot.slane %v31, %v37
  %v39 = vcombine.high %v38, 0.0
  %v40 = vcombine.low %v21, %v25
  %v42 = vunpack.c.l.s4 1934713408
  %v43 = vunpack.c.0.s8 %v42
  %v44 = vlaneseq
  %v45 = vshrl.u32 %v44, 7
  %v46 = vsub.s32 %v43, %v45
  %v47 = vrot.slane %v40, %v46
  %v48 = vcombine.high %v47, 0.0
  %v49 = vcombine.low %v14, %v18
  %v51 = vunpack.c.l.s4 1934713408
  %v52 = vunpack.c.0.s8 %v51
  %v53 = vlaneseq
  %v54 = vshrl.u32 %v53, 7
  %v55 = vsub.s32 %v52, %v54
  %v56 = vrot.slane %v49, %v55
  %v57 = vcombine.high %v56, 0.0
  %v58 = vcombine.low %v22, %v26
  %v60 = vunpack.c.l.s4 1934713408
  %v61 = vunpack.c.0.s8 %v60
  %v62 = vlaneseq
  %v63 = vshrl.u32 %v62, 7
  %v64 = vsub.s32 %v61, %v63
  %v65 = vrot.slane %v58, %v64
  %v66 = vcombine.high %v65, 0.0
  %v75 = vcombine.low %v38, %v47
  %v76 = vcombine.low %v56, %v65
  %v78 = vunpack.c.l.s4 1983009808
  %v79 = vunpack.c.0.s8 %v78
  %v80 = vlaneseq
  %v81 = vshrl.u32 %v80, 7
  %v82 = vsub.s32 %v79, %v81
  %v83 = vrot.slane %v75, %v82
  %v85 = vunpack.c.l.s4 1983009808
  %v86 = vunpack.c.0.s8 %v85
  %v87 = vlaneseq
  %v88 = vshrl.u32 %v87, 7
  %v89 = vsub.s32 %v86, %v88
  %v90 = vrot.slane %v76, %v89
  %v91 = vcombine.low %v83, %v90
  %v92 = vcombine.low %v39, %v48
  %v93 = vcombine.low %v57, %v66
  %v95 = vunpack.c.l.s4 1983009808
  %v96 = vunpack.c.0.s8 %v95
  %v97 = vlaneseq
  %v98 = vshrl.u32 %v97, 7
  %v99 = vsub.s32 %v96, %v98
  %v100 = vrot.slane %v92, %v99
  %v102 = vunpack.c.l.s4 1983009808
  %v103 = vunpack.c.0.s8 %v102
  %v104 = vlaneseq
  %v105 = vshrl.u32 %v104, 7
  %v106 = vsub.s32 %v103, %v105
  %v107 = vrot.slane %v93, %v106
  %v108 = vcombine.low %v100, %v107
  %v111 = vpack.c.bf16 %v91, %v91
  %v112 = vpack.c.bf16 %v108, %v108
  %v113 = vld [vmem:[%s1] sm:$0xf]
  %v114 = vld [vmem:[%s1 + $0x4] sm:$0xf]
  %v115 = vld [vmem:[%s1 + $0x8] sm:$0xf]
  %v116 = vld [vmem:[%s1 + $0xc] sm:$0xf]
  %v119 = vunpack.c.l.b16 %v111
  %v120 = vunpack.c.l.b16 %v112
  %v121 = vpack.c.b16 %v120, %v119
  %v126 = vunpack.c.l.b16 %v113
  %v127 = vunpack.c.l.b16 %v114
  %v128 = vunpack.c.l.b16 %v115
  %v129 = vunpack.c.l.b16 %v116
  %v130 = vpack.c.b16 %v127, %v126
  %v131 = vpack.c.b16 %v129, %v128
  %vm134 = vcmask 261120
  %v136 = vsel %vm134, %v121, 0
  %138 = vmatprep.subr.bf16.mxu0 0
  %139 = vmatpush1.bf16.msra.mxu0 %v130
  %140 = vmatprep.subr.bf16.mxu0 0
  %141 = vmatpush1.bf16.msra.mxu0 %v131
  %142 = vmatprep.subr.bf16.mxu0 0
  %143 = vmatpush1.bf16.msra.mxu0 0
  %144 = vmatprep.subr.bf16.mxu0 0
  %145 = vmatpush1.bf16.msra.mxu0 0
  %146 = vmatprep.subr.bf16.mxu0 0
  %147 = vmatpush1.bf16.msra.mxu0 0
  %148 = vmatprep.subr.bf16.mxu0 0
  %149 = vmatpush1.bf16.msra.mxu0 0
  %150 = vmatprep.subr.bf16.mxu0 0
  %151 = vmatpush1.bf16.msra.mxu0 0
  %152 = vmatprep.subr.bf16.mxu0 0
  %153 = vmatpush1.bf16.msra.mxu0 0
  %154 = vmatprep.subr.bf16.mxu0 0
  %155 = vmatpush1.bf16.msra.mxu0 0
  %156 = vmatprep.subr.bf16.mxu0 0
  %157 = vmatpush1.bf16.msra.mxu0 0
  %158 = vmatprep.subr.bf16.mxu0 0
  %159 = vmatpush1.bf16.msra.mxu0 0
  %160 = vmatprep.subr.bf16.mxu0 0
  %161 = vmatpush1.bf16.msra.mxu0 0
  %162 = vmatprep.subr.bf16.mxu0 0
  %163 = vmatpush1.bf16.msra.mxu0 0
  %164 = vmatprep.subr.bf16.mxu0 0
  %165 = vmatpush1.bf16.msra.mxu0 0
  %166 = vmatprep.subr.bf16.mxu0 0
  %167 = vmatpush1.bf16.msra.mxu0 0
  %168 = vmatprep.subr.bf16.mxu0 0
  %169 = vmatpush1.bf16.msra.mxu0 0
  %170 = vmatprep.mubr.bf16.mxu0 0
  %171 = vmatmul.mubr.bf16.gmra.mrb[0].mxu0 %v136
  %v172 = vpop.f32.mrb[0].mxu0
  %v173 = vadd.f32 0.0, %v172
  %v174 = vpop.f32.mrb[0].mxu0
  %v175 = vpop.f32.mrb[0].mxu0
  %v176 = vadd.f32 0.0, %v175
  %v177 = vpop.f32.mrb[0].mxu0
  %178 = vdwg.mxu0
  %v179 = vpack.c.bf16 %v173, %v173
  %v180 = vpack.c.bf16 %v176, %v176
  %182 = vrot.lane.b32.xlu0 %v179, 96
  %v183 = vpop.permute.xlu0 %182
  %vm184 = vcmask 130048
  %v186 = vsel %vm184, %v179, 0
  %v189 = vsel %vm184, %v183, 0
  %191 = vmatprep.subr.bf16.mxu0 0
  %192 = vmatpush1.bf16.xpose.msra.mxu0 %v189
  %193 = vmatprep.subr.bf16.mxu0 0
  %194 = vmatpush1.bf16.xpose.msra.mxu0 0
  %195 = vmatprep.subr.bf16.mxu0 0
  %196 = vmatpush1.bf16.xpose.msra.mxu0 0
  %197 = vmatprep.subr.bf16.mxu0 0
  %198 = vmatpush1.bf16.xpose.msra.mxu0 0
  %199 = vmatprep.subr.bf16.mxu0 0
  %200 = vmatpush1.bf16.xpose.msra.mxu0 0
  %201 = vmatprep.subr.bf16.mxu0 0
  %202 = vmatpush1.bf16.xpose.msra.mxu0 0
  %203 = vmatprep.subr.bf16.mxu0 0
  %204 = vmatpush1.bf16.xpose.msra.mxu0 0
  %205 = vmatprep.subr.bf16.mxu0 0
  %206 = vmatpush1.bf16.xpose.msra.mxu0 0
  %207 = vmatprep.subr.bf16.mxu0 0
  %208 = vmatpush1.bf16.xpose.msra.mxu0 0
  %209 = vmatprep.subr.bf16.mxu0 0
  %210 = vmatpush1.bf16.xpose.msra.mxu0 0
  %211 = vmatprep.subr.bf16.mxu0 0
  %212 = vmatpush1.bf16.xpose.msra.mxu0 0
  %213 = vmatprep.subr.bf16.mxu0 0
  %214 = vmatpush1.bf16.xpose.msra.mxu0 0
  %215 = vmatprep.subr.bf16.mxu0 0
  %216 = vmatpush1.bf16.xpose.msra.mxu0 0
  %217 = vmatprep.subr.bf16.mxu0 0
  %218 = vmatpush1.bf16.xpose.msra.mxu0 0
  %219 = vmatprep.subr.bf16.mxu0 0
  %220 = vmatpush1.bf16.xpose.msra.mxu0 0
  %221 = vmatprep.subr.bf16.mxu0 0
  %222 = vmatpush1.bf16.xpose.msra.mxu0 0
  %223 = vmatprep.mubr.bf16.mxu0 0
  %224 = vmatmul.mubr.bf16.gmra.mrb[0].mxu0 %v186
  %v225 = vpop.f32.mrb[0].mxu0
  %v226 = vadd.f32 0.0, %v225
  %v227 = vpop.f32.mrb[0].mxu0
  %v228 = vpop.f32.mrb[0].mxu0
  %v229 = vpop.f32.mrb[0].mxu0
  %230 = vdwg.mxu0
  %232 = vrot.lane.b32.xlu0 %v180, 96
  %v233 = vpop.permute.xlu0 %232
  %v235 = vsel %vm184, %v180, 0
  %v238 = vsel %vm184, %v233, 0
  %240 = vmatprep.subr.bf16.mxu0 0
  %241 = vmatpush1.bf16.xpose.msra.mxu0 %v238
  %242 = vmatprep.subr.bf16.mxu0 0
  %243 = vmatpush1.bf16.xpose.msra.mxu0 0
  %244 = vmatprep.subr.bf16.mxu0 0
  %245 = vmatpush1.bf16.xpose.msra.mxu0 0
  %246 = vmatprep.subr.bf16.mxu0 0
  %247 = vmatpush1.bf16.xpose.msra.mxu0 0
  %248 = vmatprep.subr.bf16.mxu0 0
  %249 = vmatpush1.bf16.xpose.msra.mxu0 0
  %250 = vmatprep.subr.bf16.mxu0 0
  %251 = vmatpush1.bf16.xpose.msra.mxu0 0
  %252 = vmatprep.subr.bf16.mxu0 0
  %253 = vmatpush1.bf16.xpose.msra.mxu0 0
  %254 = vmatprep.subr.bf16.mxu0 0
  %255 = vmatpush1.bf16.xpose.msra.mxu0 0
  %256 = vmatprep.subr.bf16.mxu0 0
  %257 = vmatpush1.bf16.xpose.msra.mxu0 0
  %258 = vmatprep.subr.bf16.mxu0 0
  %259 = vmatpush1.bf16.xpose.msra.mxu0 0
  %260 = vmatprep.subr.bf16.mxu0 0
  %261 = vmatpush1.bf16.xpose.msra.mxu0 0
  %262 = vmatprep.subr.bf16.mxu0 0
  %263 = vmatpush1.bf16.xpose.msra.mxu0 0
  %264 = vmatprep.subr.bf16.mxu0 0
  %265 = vmatpush1.bf16.xpose.msra.mxu0 0
  %266 = vmatprep.subr.bf16.mxu0 0
  %267 = vmatpush1.bf16.xpose.msra.mxu0 0
  %268 = vmatprep.subr.bf16.mxu0 0
  %269 = vmatpush1.bf16.xpose.msra.mxu0 0
  %270 = vmatprep.subr.bf16.mxu0 0
  %271 = vmatpush1.bf16.xpose.msra.mxu0 0
  %272 = vmatprep.mubr.bf16.mxu0 0
  %273 = vmatmul.mubr.bf16.gmra.mrb[0].mxu0 %v235
  %v274 = vpop.f32.mrb[0].mxu0
  %v275 = vadd.f32 0.0, %v274
  %v276 = vpop.f32.mrb[0].mxu0
  %v277 = vpop.f32.mrb[0].mxu0
  %v278 = vpop.f32.mrb[0].mxu0
  %279 = vdwg.mxu0
  %vm280 = vcmask 64512
  %v281 = vsel %vm280, %v226, -inf
  %282 = vmax.xlane.f32.xlu0 %v281
  %v283 = vpop.xlane.xlu0 %282
  %v284 = vsel %vm280, %v275, -inf
  %285 = vmax.xlane.f32.xlu0 %v284
  %v286 = vpop.xlane.xlu0 %285
  %v287 = vsub.f32 %v226, %v283
  %v288 = vsub.f32 %v275, %v286
  %v289 = vmul.f32 %v287, 1.442695
  %v290 = vpow.pop %v289
  %v291 = vmul.f32 %v288, 1.442695
  %v292 = vpow.pop %v291
  %v293 = vsel %vm280, %v290, 0.0
  %294 = vadd.xlane.f32.xlu0 %v293
  %v295 = vpop.xlane.xlu0 %294
  %v296 = vsel %vm280, %v292, 0.0
  %297 = vadd.xlane.f32.xlu0 %v296
  %v298 = vpop.xlane.xlu0 %297
  %v299 = vrcp.pop %v295
  %v300 = vmul.f32 %v290, %v299
  %v301 = vrcp.pop %v298
  %v302 = vmul.f32 %v292, %v301
  %v303 = vpack.c.bf16 %v300, %v300
  %v304 = vpack.c.bf16 %v302, %v302
  %305 = vrot.lane.b32.xlu0 %v179, 64
  %v306 = vpop.permute.xlu0 %305
  %v308 = vsel %vm280, %v303, 0
  %vm310 = vcmask 1043456
  %v312 = vsel %vm310, %v306, 0
  %314 = vmatprep.subr.bf16.mxu0 0
  %315 = vmatpush1.bf16.msra.mxu0 %v312
  %316 = vmatprep.subr.bf16.mxu0 0
  %317 = vmatpush1.bf16.msra.mxu0 0
  %318 = vmatprep.subr.bf16.mxu0 0
  %319 = vmatpush1.bf16.msra.mxu0 0
  %320 = vmatprep.subr.bf16.mxu0 0
  %321 = vmatpush1.bf16.msra.mxu0 0
  %322 = vmatprep.subr.bf16.mxu0 0
  %323 = vmatpush1.bf16.msra.mxu0 0
  %324 = vmatprep.subr.bf16.mxu0 0
  %325 = vmatpush1.bf16.msra.mxu0 0
  %326 = vmatprep.subr.bf16.mxu0 0
  %327 = vmatpush1.bf16.msra.mxu0 0
  %328 = vmatprep.subr.bf16.mxu0 0
  %329 = vmatpush1.bf16.msra.mxu0 0
  %330 = vmatprep.subr.bf16.mxu0 0
  %331 = vmatpush1.bf16.msra.mxu0 0
  %332 = vmatprep.subr.bf16.mxu0 0
  %333 = vmatpush1.bf16.msra.mxu0 0
  %334 = vmatprep.subr.bf16.mxu0 0
  %335 = vmatpush1.bf16.msra.mxu0 0
  %336 = vmatprep.subr.bf16.mxu0 0
  %337 = vmatpush1.bf16.msra.mxu0 0
  %338 = vmatprep.subr.bf16.mxu0 0
  %339 = vmatpush1.bf16.msra.mxu0 0
  %340 = vmatprep.subr.bf16.mxu0 0
  %341 = vmatpush1.bf16.msra.mxu0 0
  %342 = vmatprep.subr.bf16.mxu0 0
  %343 = vmatpush1.bf16.msra.mxu0 0
  %344 = vmatprep.subr.bf16.mxu0 0
  %345 = vmatpush1.bf16.msra.mxu0 0
  %346 = vmatprep.mubr.bf16.mxu0 0
  %347 = vmatmul.mubr.bf16.gmra.mrb[0].mxu0 %v308
  %v348 = vpop.f32.mrb[0].mxu0
  %v349 = vadd.f32 0.0, %v348
  %v350 = vpop.f32.mrb[0].mxu0
  %v351 = vpop.f32.mrb[0].mxu0
  %v352 = vpop.f32.mrb[0].mxu0
  %353 = vdwg.mxu0
  %354 = vrot.lane.b32.xlu0 %v180, 64
  %v355 = vpop.permute.xlu0 %354
  %v357 = vsel %vm280, %v304, 0
  %v360 = vsel %vm310, %v355, 0
  %362 = vmatprep.subr.bf16.mxu0 0
  %363 = vmatpush1.bf16.msra.mxu0 %v360
  %364 = vmatprep.subr.bf16.mxu0 0
  %365 = vmatpush1.bf16.msra.mxu0 0
  %366 = vmatprep.subr.bf16.mxu0 0
  %367 = vmatpush1.bf16.msra.mxu0 0
  %368 = vmatprep.subr.bf16.mxu0 0
  %369 = vmatpush1.bf16.msra.mxu0 0
  %370 = vmatprep.subr.bf16.mxu0 0
  %371 = vmatpush1.bf16.msra.mxu0 0
  %372 = vmatprep.subr.bf16.mxu0 0
  %373 = vmatpush1.bf16.msra.mxu0 0
  %374 = vmatprep.subr.bf16.mxu0 0
  %375 = vmatpush1.bf16.msra.mxu0 0
  %376 = vmatprep.subr.bf16.mxu0 0
  %377 = vmatpush1.bf16.msra.mxu0 0
  %378 = vmatprep.subr.bf16.mxu0 0
  %379 = vmatpush1.bf16.msra.mxu0 0
  %380 = vmatprep.subr.bf16.mxu0 0
  %381 = vmatpush1.bf16.msra.mxu0 0
  %382 = vmatprep.subr.bf16.mxu0 0
  %383 = vmatpush1.bf16.msra.mxu0 0
  %384 = vmatprep.subr.bf16.mxu0 0
  %385 = vmatpush1.bf16.msra.mxu0 0
  %386 = vmatprep.subr.bf16.mxu0 0
  %387 = vmatpush1.bf16.msra.mxu0 0
  %388 = vmatprep.subr.bf16.mxu0 0
  %389 = vmatpush1.bf16.msra.mxu0 0
  %390 = vmatprep.subr.bf16.mxu0 0
  %391 = vmatpush1.bf16.msra.mxu0 0
  %392 = vmatprep.subr.bf16.mxu0 0
  %393 = vmatpush1.bf16.msra.mxu0 0
  %394 = vmatprep.mubr.bf16.mxu0 0
  %395 = vmatmul.mubr.bf16.gmra.mrb[0].mxu0 %v357
  %v396 = vpop.f32.mrb[0].mxu0
  %v397 = vadd.f32 0.0, %v396
  %v398 = vpop.f32.mrb[0].mxu0
  %v399 = vpop.f32.mrb[0].mxu0
  %v400 = vpop.f32.mrb[0].mxu0
  %401 = vdwg.mxu0
  %402 = vrot.lane.b32.xlu0 %v179, 112
  %v403 = vpop.permute.xlu0 %402
  %404 = vrot.lane.b32.xlu0 %v179, 80
  %v405 = vpop.permute.xlu0 %404
  %v407 = vsel %vm184, %v403, 0
  %v410 = vsel %vm184, %v405, 0
  %412 = vmatprep.subr.bf16.mxu0 0
  %413 = vmatpush1.bf16.xpose.msra.mxu0 %v410
  %414 = vmatprep.subr.bf16.mxu0 0
  %415 = vmatpush1.bf16.xpose.msra.mxu0 0
  %416 = vmatprep.subr.bf16.mxu0 0
  %417 = vmatpush1.bf16.xpose.msra.mxu0 0
  %418 = vmatprep.subr.bf16.mxu0 0
  %419 = vmatpush1.bf16.xpose.msra.mxu0 0
  %420 = vmatprep.subr.bf16.mxu0 0
  %421 = vmatpush1.bf16.xpose.msra.mxu0 0
  %422 = vmatprep.subr.bf16.mxu0 0
  %423 = vmatpush1.bf16.xpose.msra.mxu0 0
  %424 = vmatprep.subr.bf16.mxu0 0
  %425 = vmatpush1.bf16.xpose.msra.mxu0 0
  %426 = vmatprep.subr.bf16.mxu0 0
  %427 = vmatpush1.bf16.xpose.msra.mxu0 0
  %428 = vmatprep.subr.bf16.mxu0 0
  %429 = vmatpush1.bf16.xpose.msra.mxu0 0
  %430 = vmatprep.subr.bf16.mxu0 0
  %431 = vmatpush1.bf16.xpose.msra.mxu0 0
  %432 = vmatprep.subr.bf16.mxu0 0
  %433 = vmatpush1.bf16.xpose.msra.mxu0 0
  %434 = vmatprep.subr.bf16.mxu0 0
  %435 = vmatpush1.bf16.xpose.msra.mxu0 0
  %436 = vmatprep.subr.bf16.mxu0 0
  %437 = vmatpush1.bf16.xpose.msra.mxu0 0
  %438 = vmatprep.subr.bf16.mxu0 0
  %439 = vmatpush1.bf16.xpose.msra.mxu0 0
  %440 = vmatprep.subr.bf16.mxu0 0
  %441 = vmatpush1.bf16.xpose.msra.mxu0 0
  %442 = vmatprep.subr.bf16.mxu0 0
  %443 = vmatpush1.bf16.xpose.msra.mxu0 0
  %444 = vmatprep.mubr.bf16.mxu0 0
  %445 = vmatmul.mubr.bf16.gmra.mrb[0].mxu0 %v407
  %v446 = vpop.f32.mrb[0].mxu0
  %v447 = vadd.f32 0.0, %v446
  %v448 = vpop.f32.mrb[0].mxu0
  %v449 = vpop.f32.mrb[0].mxu0
  %v450 = vpop.f32.mrb[0].mxu0
  %451 = vdwg.mxu0
  %452 = vrot.lane.b32.xlu0 %v180, 112
  %v453 = vpop.permute.xlu0 %452
  %454 = vrot.lane.b32.xlu0 %v180, 80
  %v455 = vpop.permute.xlu0 %454
  %v457 = vsel %vm184, %v453, 0
  %v460 = vsel %vm184, %v455, 0
  %462 = vmatprep.subr.bf16.mxu0 0
  %463 = vmatpush1.bf16.xpose.msra.mxu0 %v460
  %464 = vmatprep.subr.bf16.mxu0 0
  %465 = vmatpush1.bf16.xpose.msra.mxu0 0
  %466 = vmatprep.subr.bf16.mxu0 0
  %467 = vmatpush1.bf16.xpose.msra.mxu0 0
  %468 = vmatprep.subr.bf16.mxu0 0
  %469 = vmatpush1.bf16.xpose.msra.mxu0 0
  %470 = vmatprep.subr.bf16.mxu0 0
  %471 = vmatpush1.bf16.xpose.msra.mxu0 0
  %472 = vmatprep.subr.bf16.mxu0 0
  %473 = vmatpush1.bf16.xpose.msra.mxu0 0
  %474 = vmatprep.subr.bf16.mxu0 0
  %475 = vmatpush1.bf16.xpose.msra.mxu0 0
  %476 = vmatprep.subr.bf16.mxu0 0
  %477 = vmatpush1.bf16.xpose.msra.mxu0 0
  %478 = vmatprep.subr.bf16.mxu0 0
  %479 = vmatpush1.bf16.xpose.msra.mxu0 0
  %480 = vmatprep.subr.bf16.mxu0 0
  %481 = vmatpush1.bf16.xpose.msra.mxu0 0
  %482 = vmatprep.subr.bf16.mxu0 0
  %483 = vmatpush1.bf16.xpose.msra.mxu0 0
  %484 = vmatprep.subr.bf16.mxu0 0
  %485 = vmatpush1.bf16.xpose.msra.mxu0 0
  %486 = vmatprep.subr.bf16.mxu0 0
  %487 = vmatpush1.bf16.xpose.msra.mxu0 0
  %488 = vmatprep.subr.bf16.mxu0 0
  %489 = vmatpush1.bf16.xpose.msra.mxu0 0
  %490 = vmatprep.subr.bf16.mxu0 0
  %491 = vmatpush1.bf16.xpose.msra.mxu0 0
  %492 = vmatprep.subr.bf16.mxu0 0
  %493 = vmatpush1.bf16.xpose.msra.mxu0 0
  %494 = vmatprep.mubr.bf16.mxu0 0
  %495 = vmatmul.mubr.bf16.gmra.mrb[0].mxu0 %v457
  %v496 = vpop.f32.mrb[0].mxu0
  %v497 = vadd.f32 0.0, %v496
  %v498 = vpop.f32.mrb[0].mxu0
  %v499 = vpop.f32.mrb[0].mxu0
  %v500 = vpop.f32.mrb[0].mxu0
  %501 = vdwg.mxu0
  %v502 = vsel %vm280, %v447, -inf
  %503 = vmax.xlane.f32.xlu0 %v502
  %v504 = vpop.xlane.xlu0 %503
  %v505 = vsel %vm280, %v497, -inf
  %506 = vmax.xlane.f32.xlu0 %v505
  %v507 = vpop.xlane.xlu0 %506
  %v508 = vsub.f32 %v447, %v504
  %v509 = vsub.f32 %v497, %v507
  %v510 = vmul.f32 %v508, 1.442695
  %v511 = vpow.pop %v510
  %v512 = vmul.f32 %v509, 1.442695
  %v513 = vpow.pop %v512
  %v514 = vsel %vm280, %v511, 0.0
  %515 = vadd.xlane.f32.xlu0 %v514
  %v516 = vpop.xlane.xlu0 %515
  %v517 = vsel %vm280, %v513, 0.0
  %518 = vadd.xlane.f32.xlu0 %v517
  %v519 = vpop.xlane.xlu0 %518
  %v520 = vrcp.pop %v516
  %v521 = vmul.f32 %v511, %v520
  %v522 = vrcp.pop %v519
  %v523 = vmul.f32 %v513, %v522
  %v524 = vpack.c.bf16 %v521, %v521
  %v525 = vpack.c.bf16 %v523, %v523
  %526 = vrot.lane.b32.xlu0 %v179, 48
  %v527 = vpop.permute.xlu0 %526
  %v529 = vsel %vm280, %v524, 0
  %v532 = vsel %vm310, %v527, 0
  %534 = vmatprep.subr.bf16.mxu0 0
  %535 = vmatpush1.bf16.msra.mxu0 %v532
  %536 = vmatprep.subr.bf16.mxu0 0
  %537 = vmatpush1.bf16.msra.mxu0 0
  %538 = vmatprep.subr.bf16.mxu0 0
  %539 = vmatpush1.bf16.msra.mxu0 0
  %540 = vmatprep.subr.bf16.mxu0 0
  %541 = vmatpush1.bf16.msra.mxu0 0
  %542 = vmatprep.subr.bf16.mxu0 0
  %543 = vmatpush1.bf16.msra.mxu0 0
  %544 = vmatprep.subr.bf16.mxu0 0
  %545 = vmatpush1.bf16.msra.mxu0 0
  %546 = vmatprep.subr.bf16.mxu0 0
  %547 = vmatpush1.bf16.msra.mxu0 0
  %548 = vmatprep.subr.bf16.mxu0 0
  %549 = vmatpush1.bf16.msra.mxu0 0
  %550 = vmatprep.subr.bf16.mxu0 0
  %551 = vmatpush1.bf16.msra.mxu0 0
  %552 = vmatprep.subr.bf16.mxu0 0
  %553 = vmatpush1.bf16.msra.mxu0 0
  %554 = vmatprep.subr.bf16.mxu0 0
  %555 = vmatpush1.bf16.msra.mxu0 0
  %556 = vmatprep.subr.bf16.mxu0 0
  %557 = vmatpush1.bf16.msra.mxu0 0
  %558 = vmatprep.subr.bf16.mxu0 0
  %559 = vmatpush1.bf16.msra.mxu0 0
  %560 = vmatprep.subr.bf16.mxu0 0
  %561 = vmatpush1.bf16.msra.mxu0 0
  %562 = vmatprep.subr.bf16.mxu0 0
  %563 = vmatpush1.bf16.msra.mxu0 0
  %564 = vmatprep.subr.bf16.mxu0 0
  %565 = vmatpush1.bf16.msra.mxu0 0
  %566 = vmatprep.mubr.bf16.mxu0 0
  %567 = vmatmul.mubr.bf16.gmra.mrb[0].mxu0 %v529
  %v568 = vpop.f32.mrb[0].mxu0
  %v569 = vadd.f32 0.0, %v568
  %v570 = vpop.f32.mrb[0].mxu0
  %v571 = vpop.f32.mrb[0].mxu0
  %v572 = vpop.f32.mrb[0].mxu0
  %573 = vdwg.mxu0
  %574 = vrot.lane.b32.xlu0 %v180, 48
  %v575 = vpop.permute.xlu0 %574
  %v577 = vsel %vm280, %v525, 0
  %v580 = vsel %vm310, %v575, 0
  %582 = vmatprep.subr.bf16.mxu0 0
  %583 = vmatpush1.bf16.msra.mxu0 %v580
  %584 = vmatprep.subr.bf16.mxu0 0
  %585 = vmatpush1.bf16.msra.mxu0 0
  %586 = vmatprep.subr.bf16.mxu0 0
  %587 = vmatpush1.bf16.msra.mxu0 0
  %588 = vmatprep.subr.bf16.mxu0 0
  %589 = vmatpush1.bf16.msra.mxu0 0
  %590 = vmatprep.subr.bf16.mxu0 0
  %591 = vmatpush1.bf16.msra.mxu0 0
  %592 = vmatprep.subr.bf16.mxu0 0
  %593 = vmatpush1.bf16.msra.mxu0 0
  %594 = vmatprep.subr.bf16.mxu0 0
  %595 = vmatpush1.bf16.msra.mxu0 0
  %596 = vmatprep.subr.bf16.mxu0 0
  %597 = vmatpush1.bf16.msra.mxu0 0
  %598 = vmatprep.subr.bf16.mxu0 0
  %599 = vmatpush1.bf16.msra.mxu0 0
  %600 = vmatprep.subr.bf16.mxu0 0
  %601 = vmatpush1.bf16.msra.mxu0 0
  %602 = vmatprep.subr.bf16.mxu0 0
  %603 = vmatpush1.bf16.msra.mxu0 0
  %604 = vmatprep.subr.bf16.mxu0 0
  %605 = vmatpush1.bf16.msra.mxu0 0
  %606 = vmatprep.subr.bf16.mxu0 0
  %607 = vmatpush1.bf16.msra.mxu0 0
  %608 = vmatprep.subr.bf16.mxu0 0
  %609 = vmatpush1.bf16.msra.mxu0 0
  %610 = vmatprep.subr.bf16.mxu0 0
  %611 = vmatpush1.bf16.msra.mxu0 0
  %612 = vmatprep.subr.bf16.mxu0 0
  %613 = vmatpush1.bf16.msra.mxu0 0
  %614 = vmatprep.mubr.bf16.mxu0 0
  %615 = vmatmul.mubr.bf16.gmra.mrb[0].mxu0 %v577
  %v616 = vpop.f32.mrb[0].mxu0
  %v617 = vadd.f32 0.0, %v616
  %v618 = vpop.f32.mrb[0].mxu0
  %v619 = vpop.f32.mrb[0].mxu0
  %v620 = vpop.f32.mrb[0].mxu0
  %621 = vdwg.mxu0
  %624 = vrot.lane.b32.xlu0 %v569, 16
  %v625 = vpop.permute.xlu0 %624
  %626 = vrot.lane.b32.xlu0 %v617, 16
  %v627 = vpop.permute.xlu0 %626
  %v630 = vsel %vm184, %v349, %v625
  %v631 = vsel %vm184, %v397, %v627
  %v632 = vcombine.high %v630, 0.0
  %v634 = vunpack.c.l.s4 1983009808
  %v635 = vunpack.c.0.s8 %v634
  %v636 = vlaneseq
  %v637 = vshrl.u32 %v636, 7
  %v638 = vsub.s32 %v635, %v637
  %v639 = vrot.slane %v630, %v638
  %v641 = vunpack.c.l.s4 1983009808
  %v642 = vunpack.c.0.s8 %v641
  %v643 = vlaneseq
  %v644 = vshrl.u32 %v643, 7
  %v645 = vsub.s32 %v642, %v644
  %v646 = vrot.slane %v632, %v645
  %v647 = vcombine.high %v631, 0.0
  %v649 = vunpack.c.l.s4 1983009808
  %v650 = vunpack.c.0.s8 %v649
  %v651 = vlaneseq
  %v652 = vshrl.u32 %v651, 7
  %v653 = vsub.s32 %v650, %v652
  %v654 = vrot.slane %v631, %v653
  %v656 = vunpack.c.l.s4 1983009808
  %v657 = vunpack.c.0.s8 %v656
  %v658 = vlaneseq
  %v659 = vshrl.u32 %v658, 7
  %v660 = vsub.s32 %v657, %v659
  %v661 = vrot.slane %v647, %v660
  %v662 = vcombine.low %v639, %v654
  %v663 = vcombine.high %v639, %v654
  %v665 = vunpack.c.l.s4 1934713408
  %v666 = vunpack.c.0.s8 %v665
  %v667 = vlaneseq
  %v668 = vshrl.u32 %v667, 7
  %v669 = vsub.s32 %v666, %v668
  %v670 = vrot.slane %v662, %v669
  %v672 = vunpack.c.l.s4 1934713408
  %v673 = vunpack.c.0.s8 %v672
  %v674 = vlaneseq
  %v675 = vshrl.u32 %v674, 7
  %v676 = vsub.s32 %v673, %v675
  %v677 = vrot.slane %v663, %v676
  %v678 = vcombine.low %v646, %v661
  %v679 = vcombine.high %v646, %v661
  %v681 = vunpack.c.l.s4 1934713408
  %v682 = vunpack.c.0.s8 %v681
  %v683 = vlaneseq
  %v684 = vshrl.u32 %v683, 7
  %v685 = vsub.s32 %v682, %v684
  %v686 = vrot.slane %v678, %v685
  %v688 = vunpack.c.l.s4 1934713408
  %v689 = vunpack.c.0.s8 %v688
  %v690 = vlaneseq
  %v691 = vshrl.u32 %v690, 7
  %v692 = vsub.s32 %v689, %v691
  %v693 = vrot.slane %v679, %v692
  %v694 = vcombine.high %v670, 0.0
  %v695 = vcombine.high %v677, 0.0
  %v696 = vcombine.high %v686, 0.0
  %v697 = vcombine.high %v693, 0.0
  %699 = vrot.lane.b32.xlu0 %v694, 32
  %v700 = vpop.permute.xlu0 %699
  %703 = vrot.lane.b32.xlu0 %v677, 64
  %v704 = vpop.permute.xlu0 %703
  %707 = vrot.lane.b32.xlu0 %v695, 96
  %v708 = vpop.permute.xlu0 %707
  %711 = vrot.lane.b32.xlu0 %v696, 32
  %v712 = vpop.permute.xlu0 %711
  %715 = vrot.lane.b32.xlu0 %v693, 64
  %v716 = vpop.permute.xlu0 %715
  %719 = vrot.lane.b32.xlu0 %v697, 96
  %v720 = vpop.permute.xlu0 %719
  %v722 = vsel %vm134, %v670, %v700
  %vm723 = vcmask 523264
  %v724 = vsel %vm723, %v722, %v704
  %vm725 = vcmask 785408
  %v726 = vsel %vm725, %v724, %v708
  %v727 = vsel %vm134, %v686, %v712
  %v728 = vsel %vm723, %v727, %v716
  %v729 = vsel %vm725, %v728, %v720
  %v731 = vunpack.c.l.s4 1983009808
  %v732 = vunpack.c.0.s8 %v731
  %v733 = vlaneseq
  %v734 = vshrl.u32 %v733, 7
  %v735 = vsub.s32 %v732, %v734
  %v736 = vrot.slane %v12, %v735
  %v737 = vcombine.high %v736, %v736
  %v740 = vadd.f32 %v726, %v736
  %v741 = vadd.f32 %v729, %v737
  %v742 = vmax.f32 %v740, 0.0
  %v743 = vmax.f32 %v741, 0.0
  %v746 = vcombine.low %v742, %v743
  %v748 = vunpack.c.l.s4 1983009808
  %v749 = vunpack.c.0.s8 %v748
  %v750 = vlaneseq
  %v751 = vshrl.u32 %v750, 7
  %v752 = vsub.s32 %v749, %v751
  %v753 = vrot.slane %v746, %v752
  %755 = vst [vmem:[%s2] sm:$0xf] %v753
  // Predicated region
  $region10: #{multi_head_self_attention.1} parent=0 // pred_check
    _
  $region11: #{multi_head_self_attention.1} parent=0 // pred_check_branch
    %757 = sbr.rel (0) target = $region13
  $region12: #{multi_head_self_attention.1} parent=0 // pred_region
    _
  $region13: #{multi_head_self_attention.1} parent=0 // pred_fallthru
    _
  // Predicated region
  $region14: #{multi_head_self_attention.1} parent=0 // pred_check
    _
  $region15: #{multi_head_self_attention.1} parent=0 // pred_check_branch
    %759 = sbr.rel (0) target = $region17
  $region16: #{multi_head_self_attention.1} parent=0 // pred_region
    _
  $region17: #{multi_head_self_attention.1} parent=0 // pred_fallthru
    _

</llo_original>
